<compile_context>
chip_gen: v7x
topology: tpu7x:2x2x1
jax: 0.10.0
libtpu: 0.0.40
codegen_flags: <defaults>
</compile_context>

<pallas_src>
import functools

import jax
import jax.numpy as jnp
from jax.experimental import pallas as pl
from jax.experimental.pallas import tpu as pltpu


def _se_kernel(x_ref, w1_ref, w2_ref, o_ref, acc_ref, *,
               hw_total, thw, lw, needs_mask):
    # x_ref:   (tb, C, thw)   one spatial tile of the input stream
    # w1_ref:  (C, Cr)        resident (constant index_map)
    # w2_ref:  (Cr, channel)  resident (constant index_map)
    # o_ref:   (tb, channel)
    # acc_ref: (tb, C, lw) f32 lane-wise partial-sum accumulator
    s = pl.program_id(1)

    @pl.when(s == 0)
    def _():
        acc_ref[...] = jnp.zeros_like(acc_ref)

    x = x_ref[...].astype(jnp.float32)                         # (tb, C, thw)
    if needs_mask:
        # Zero out-of-range spatial positions of the (possibly padded) last tile.
        pos = s * thw + jax.lax.broadcasted_iota(jnp.int32, x.shape, 2)
        x = jnp.where(pos < hw_total, x, 0.0)

    # Lane-wise folding: static, lane-aligned slices combined with VPU adds
    # only (no XLU work in the streamed path).
    partial = x[:, :, 0:lw]
    for t in range(1, thw // lw):
        partial = partial + x[:, :, t * lw:(t + 1) * lw]
    acc_ref[...] += partial

    @pl.when(s == pl.num_programs(1) - 1)
    def _():
        # Single cross-lane (XLU) reduce per batch tile, then the mean scale.
        y = jnp.sum(acc_ref[...], axis=-1) * jnp.float32(1.0 / hw_total)  # (tb, C)
        # fc[0]: Linear(inchannel, channel // reduction, bias=False) + ReLU
        h = jnp.dot(y, w1_ref[...].astype(jnp.float32),
                    preferred_element_type=jnp.float32)        # (tb, Cr)
        h = jnp.maximum(h, 0.0)
        # fc[2]: Linear(channel // reduction, channel, bias=False) + Sigmoid
        z = jnp.dot(h, w2_ref[...].astype(jnp.float32),
                    preferred_element_type=jnp.float32)        # (tb, channel)
        o_ref[...] = jax.nn.sigmoid(z).astype(o_ref.dtype)


def se_layer(x_nchw, w1, w2, *, hw_tile=512, batch_tile=8):
    """x_nchw: (B, C, H, W); w1: (C, C//r); w2: (C//r, channel).
    Returns (B, channel, 1, 1), matching the PyTorch module output."""
    b, c, h, w = x_nchw.shape
    cr, channel = w2.shape
    assert w1.shape == (c, cr)
    assert hw_tile >= 128

    hw = h * w
    x_flat = x_nchw.reshape(b, c, hw)          # contiguous -> metadata-only reshape

    # Spatial tile: full extent (always legal) or a lane-aligned multiple of 128.
    thw = hw if hw <= hw_tile else (hw_tile // 128) * 128
    needs_mask = (hw % thw) != 0
    # Accumulator lane width: fold 128-wide chunks when thw allows it.
    lw = 128 if (thw % 128 == 0) else thw
    tb = min(b, batch_tile)

    grid = (pl.cdiv(b, tb), pl.cdiv(hw, thw))

    kernel = functools.partial(
        _se_kernel, hw_total=hw, thw=thw, lw=lw, needs_mask=needs_mask)

    out = pl.pallas_call(
        kernel,
        out_shape=jax.ShapeDtypeStruct((b, channel), x_nchw.dtype),
        grid_spec=pltpu.PrefetchScalarGridSpec(
            num_scalar_prefetch=0,
            grid=grid,
            in_specs=[
                pl.BlockSpec((tb, c, thw), lambda i, s: (i, 0, s)),
                pl.BlockSpec((c, cr), lambda i, s: (0, 0)),
                pl.BlockSpec((cr, channel), lambda i, s: (0, 0)),
            ],
            out_specs=pl.BlockSpec((tb, channel), lambda i, s: (i, 0)),
            scratch_shapes=[pltpu.VMEM((tb, c, lw), jnp.float32)],
        ),
        compiler_params=pltpu.CompilerParams(
            dimension_semantics=("parallel", "arbitrary")),
    )(x_flat, w1, w2)
    return out.reshape(b, channel, 1, 1)


def init_se_params(key, inchannel, channel, reduction=16, dtype=jnp.float32):
    """Deterministic synthetic weights with the shapes implied by __init__.
    Stored pre-transposed for row-major matmul inside the kernel."""
    hidden = channel // reduction
    k1, k2 = jax.random.split(key)
    # PyTorch Linear weight shapes: (hidden, inchannel) and (channel, hidden);
    # we keep the transposed layout (inchannel, hidden), (hidden, channel).
    w1 = jax.random.normal(k1, (inchannel, hidden), dtype) * 0.1
    w2 = jax.random.normal(k2, (hidden, channel), dtype) * 0.1
    return w1, w2


def _ref(x, w1, w2):
    y = jnp.mean(x, axis=(2, 3))
    y = jnp.maximum(y @ w1, 0.0) @ w2
    return jax.nn.sigmoid(y)[:, :, None, None]


if __name__ == "__main__":
    key = jax.random.PRNGKey(0)

    # Case 1: small shapes consistent with the module (inchannel == C of the input).
    kx, kp, key = jax.random.split(key, 3)
    B, C, H, W = 2, 32, 16, 16
    inchannel, channel, reduction = C, 32, 16          # hidden = 2
    x = jax.random.normal(kx, (B, C, H, W), jnp.float32)
    w1, w2 = init_se_params(kp, inchannel, channel, reduction)

    y = se_layer(x, w1, w2)
    jax.block_until_ready(y)
    assert y.shape == (B, channel, 1, 1)
    assert jnp.allclose(y, _ref(x, w1, w2), atol=1e-5, rtol=1e-5)

    # Case 2: exercises the gridded spatial reduction + remainder masking path
    # (HW = 576 -> tiles of 512 with a masked tail) and the lane-folding path.
    kx2, kp2, key = jax.random.split(key, 3)
    B2, C2, H2, W2 = 4, 64, 24, 24
    channel2, reduction2 = 64, 16                      # hidden = 4
    x2 = jax.random.normal(kx2, (B2, C2, H2, W2), jnp.float32)
    w1b, w2b = init_se_params(kp2, C2, channel2, reduction2)

    y2 = se_layer(x2, w1b, w2b)
    jax.block_until_ready(y2)
    assert y2.shape == (B2, channel2, 1, 1)
    assert jnp.allclose(y2, _ref(x2, w1b, w2b), atol=1e-5, rtol=1e-5)

    # Case 3: spatial extent that is not lane-aligned and fits one tile
    # (exercises the lw == thw fall-back path).
    kx3, kp3, key = jax.random.split(key, 3)
    B3, C3, H3, W3 = 3, 32, 6, 6
    x3 = jax.random.normal(kx3, (B3, C3, H3, W3), jnp.float32)
    w1c, w2c = init_se_params(kp3, C3, 32, 16)
    y3 = se_layer(x3, w1c, w2c)
    jax.block_until_ready(y3)
    assert jnp.allclose(y3, _ref(x3, w1c, w2c), atol=1e-5, rtol=1e-5)

    print("KERNEL_OK")
</pallas_src>

<mosaic_0001>
module attributes {stable_mosaic.version = 11 : i64} {
  func.func @_se_kernel(%arg0: i32, %arg1: i32, %arg2: memref<2x32x256xf32, #tpu.memory_space<vmem>>, %arg3: memref<32x2xf32, #tpu.memory_space<vmem>>, %arg4: memref<2x32xf32, #tpu.memory_space<vmem>>, %arg5: memref<2x32xf32, #tpu.memory_space<vmem>>, %arg6: memref<2x32x128xf32, #tpu.memory_space<vmem>>) attributes {dimension_semantics = [#tpu.dimension_semantics<parallel>, #tpu.dimension_semantics<arbitrary>], iteration_bounds = array<i64: 1, 1>, scalar_prefetch = 0 : i64, scratch_operands = 1 : i64, tpu.core_type = #tpu.core_type<tc>, window_params = [{transform_indices = @transform_0, window_bounds = array<i64: 2, 32, 256>}, {pipeline_mode = #tpu.pipeline_mode<synchronous>, transform_indices = @transform_1, window_bounds = array<i64: 32, 2>}, {pipeline_mode = #tpu.pipeline_mode<synchronous>, transform_indices = @transform_2, window_bounds = array<i64: 2, 32>}, {transform_indices = @transform_3, window_bounds = array<i64: 2, 32>}]} {
    %c0_i32 = arith.constant 0 : i32
    %0 = arith.cmpi eq, %arg1, %c0_i32 : i32
    %1 = arith.extui %0 : i1 to i32
    %c0_i32_0 = arith.constant 0 : i32
    %2 = arith.cmpi ne, %1, %c0_i32_0 : i32
    scf.if %2 {
      %cst = arith.constant 0.000000e+00 : f32
      %13 = vector.broadcast %cst : f32 to vector<2x32x128xf32>
      %c0_11 = arith.constant 0 : index
      %c0_12 = arith.constant 0 : index
      %c0_13 = arith.constant 0 : index
      %14 = vector.load %arg6[%c0_11, %c0_12, %c0_13] : memref<2x32x128xf32, #tpu.memory_space<vmem>>, vector<2x32x128xf32>
      tpu.vector_store %arg6[%c0_11, %c0_12, %c0_13], %13 {strides = array<i32>} : memref<2x32x128xf32, #tpu.memory_space<vmem>>, vector<2x32x128xf32>,
    } else {
    }
    %c0 = arith.constant 0 : index
    %c0_1 = arith.constant 0 : index
    %c0_2 = arith.constant 0 : index
    %3 = vector.load %arg2[%c0, %c0_1, %c0_2] : memref<2x32x256xf32, #tpu.memory_space<vmem>>, vector<2x32x256xf32>
    %4 = vector.extract_strided_slice %3 {offsets = [0, 0, 0], sizes = [2, 32, 128], strides = [1, 1, 1]} : vector<2x32x256xf32> to vector<2x32x128xf32>
    %5 = vector.extract_strided_slice %3 {offsets = [0, 0, 128], sizes = [2, 32, 128], strides = [1, 1, 1]} : vector<2x32x256xf32> to vector<2x32x128xf32>
    %6 = arith.addf %4, %5 : vector<2x32x128xf32>
    %c0_3 = arith.constant 0 : index
    %c0_4 = arith.constant 0 : index
    %c0_5 = arith.constant 0 : index
    %7 = vector.load %arg6[%c0_3, %c0_4, %c0_5] : memref<2x32x128xf32, #tpu.memory_space<vmem>>, vector<2x32x128xf32>
    %8 = arith.addf %7, %6 : vector<2x32x128xf32>
    %c0_6 = arith.constant 0 : index
    %c0_7 = arith.constant 0 : index
    %c0_8 = arith.constant 0 : index
    %9 = vector.load %arg6[%c0_6, %c0_7, %c0_8] : memref<2x32x128xf32, #tpu.memory_space<vmem>>, vector<2x32x128xf32>
    tpu.vector_store %arg6[%c0_6, %c0_7, %c0_8], %8 {strides = array<i32>} : memref<2x32x128xf32, #tpu.memory_space<vmem>>, vector<2x32x128xf32>,
    %c0_i32_9 = arith.constant 0 : i32
    %10 = arith.cmpi eq, %arg1, %c0_i32_9 : i32
    %11 = arith.extui %10 : i1 to i32
    %c0_i32_10 = arith.constant 0 : i32
    %12 = arith.cmpi ne, %11, %c0_i32_10 : i32
    scf.if %12 {
      %c0_11 = arith.constant 0 : index
      %c0_12 = arith.constant 0 : index
      %c0_13 = arith.constant 0 : index
      %13 = vector.load %arg6[%c0_11, %c0_12, %c0_13] : memref<2x32x128xf32, #tpu.memory_space<vmem>>, vector<2x32x128xf32>
      %cst = arith.constant dense<0.000000e+00> : vector<2x32xf32>
      %14 = vector.multi_reduction <add>, %13, %cst [2] : vector<2x32x128xf32> to vector<2x32xf32>
      %cst_14 = arith.constant 3.906250e-03 : f32
      %15 = vector.broadcast %cst_14 : f32 to vector<2x32xf32>
      %16 = arith.mulf %14, %15 : vector<2x32xf32>
      %c0_15 = arith.constant 0 : index
      %c0_16 = arith.constant 0 : index
      %17 = vector.load %arg3[%c0_15, %c0_16] : memref<32x2xf32, #tpu.memory_space<vmem>>, vector<32x2xf32>
      %cst_17 = arith.constant dense<0.000000e+00> : vector<2x2xf32>
      %18 = tpu.matmul %16, %17, %cst_17 {dimension_numbers = #tpu.dot_dimension_numbers<[1], [0], [0], [1], [0, 0, 1, 1], [], []>} : vector<2x32xf32>, vector<32x2xf32>, vector<2x2xf32> -> vector<2x2xf32>
      %cst_18 = arith.constant 0.000000e+00 : f32
      %19 = vector.broadcast %cst_18 : f32 to vector<2x2xf32>
      %20 = arith.maximumf %18, %19 : vector<2x2xf32>
      %c0_19 = arith.constant 0 : index
      %c0_20 = arith.constant 0 : index
      %21 = vector.load %arg4[%c0_19, %c0_20] : memref<2x32xf32, #tpu.memory_space<vmem>>, vector<2x32xf32>
      %cst_21 = arith.constant dense<0.000000e+00> : vector<2x32xf32>
      %22 = tpu.matmul %20, %21, %cst_21 {dimension_numbers = #tpu.dot_dimension_numbers<[1], [0], [0], [1], [0, 0, 1, 1], [], []>} : vector<2x2xf32>, vector<2x32xf32>, vector<2x32xf32> -> vector<2x32xf32>
      %23 = arith.negf %22 : vector<2x32xf32>
      %24 = math.exp %23 : vector<2x32xf32>
      %cst_22 = arith.constant 1.000000e+00 : f32
      %25 = vector.broadcast %cst_22 : f32 to vector<2x32xf32>
      %26 = arith.addf %25, %24 : vector<2x32xf32>
      %27 = arith.divf %25, %26 : vector<2x32xf32>
      %c0_23 = arith.constant 0 : index
      %c0_24 = arith.constant 0 : index
      %28 = vector.load %arg5[%c0_23, %c0_24] : memref<2x32xf32, #tpu.memory_space<vmem>>, vector<2x32xf32>
      tpu.vector_store %arg5[%c0_23, %c0_24], %27 {strides = array<i32>} : memref<2x32xf32, #tpu.memory_space<vmem>>, vector<2x32xf32>,
    } else {
    }
    return
  }
  func.func @transform_0(%arg0: i32, %arg1: i32) -> (i32, i32, i32) {
    %c0_i32 = arith.constant 0 : i32
    %c0_i32_0 = arith.constant 0 : i32
    return %arg0, %c0_i32, %arg1 : i32, i32, i32
  }
  func.func @transform_1(%arg0: i32, %arg1: i32) -> (i32, i32) {
    %c0_i32 = arith.constant 0 : i32
    %c0_i32_0 = arith.constant 0 : i32
    %c0_i32_1 = arith.constant 0 : i32
    return %c0_i32, %c0_i32_0 : i32, i32
  }
  func.func @transform_2(%arg0: i32, %arg1: i32) -> (i32, i32) {
    %c0_i32 = arith.constant 0 : i32
    %c0_i32_0 = arith.constant 0 : i32
    %c0_i32_1 = arith.constant 0 : i32
    return %c0_i32, %c0_i32_0 : i32, i32
  }
  func.func @transform_3(%arg0: i32, %arg1: i32) -> (i32, i32) {
    %c0_i32 = arith.constant 0 : i32
    %c0_i32_0 = arith.constant 0 : i32
    return %arg0, %c0_i32 : i32, i32
  }
}

</mosaic_0001>

<llo_original>
// kernel: tpu_custom_call.1
$region0: #{tpu_custom_call.1}
  #allocation0 [shape = 'u32[]', space=smem, size = 0x4, offset = 0x4, fixed_abs, tag = 'smem constant byte address 0x4 - core index']
  #allocation1 [shape = 'u32[144,128]{1,0:T(1,128)}', space=vmem, size = 0x12000, scoped, tag = 'internal scratch']
  #allocation2 [shape = 'f32[2,32,128]{2,1,0:T(8,128)}', space=vmem, size = 0x8000, scoped, tag = 'scratch operand']
  %s0 = inlined_call_operand.hbm [shape: f32[2,32,256], index: 0, kind: input, shape index: {}]
  %s1 = inlined_call_operand.vmem [shape: f32[32,2], index: 1, kind: input, shape index: {}]
  %s2 = inlined_call_operand.vmem [shape: f32[2,32], index: 2, kind: input, shape index: {}]
  %s3 = inlined_call_operand.hbm [shape: f32[2,32], index: 3, kind: output, shape index: {}]
  %s4 = sld [smem:[#allocation0]]
  $region34: #{tpu_custom_call.1} parent=0
    _
  %s6 = ssub.s32 1, %s4
  %s7 = scalar_select 0, %s6, %s4
  $region1: #{tpu_custom_call.1} parent=0
    #allocation3 [shape = 'u8[65536]{0}', space=vmem, size = 0x10000, scoped, tag = 'input window, operand 0, single buffered']
    #allocation4 [shape = 's32[1]{0}', space=sflag, size = 0x4, scoped, tag = 'scoped memory for tpu_custom_call.1']
    #allocation5 [shape = 's32[1]{0}', space=sflag, size = 0x4, scoped, tag = 'scoped memory for tpu_custom_call.1']
    #allocation6 [shape = 'u8[1024]{0}', space=vmem, size = 0x400, scoped, tag = 'output window, operand 0, single buffered']
    %8 = vsyncpa [#allocation4], 0
    %9 = vsyncpa [#allocation5], 0
    // Predicated region
    $region2: #{tpu_custom_call.1} parent=1 // pred_check
      _
    $region3: #{tpu_custom_call.1} parent=1 // pred_check_branch
      %11 = sbr.rel (0) target = $region5
    $region4: #{tpu_custom_call.1} parent=1 // pred_region
      %s13 = ssub.s32 2048, 2048
      %14 = vsyncadd [#allocation4], %s13
      %s15 = sshll.u32 [#allocation3], 4
      %s16 = int_to_ptr.vmem [resolvable:$true] %s15
      %21 = dma.hbm_to_vmem [thread:$0]  %s0, 2048, %s16, [#allocation4], 256, 256, 16
    $region5: #{tpu_custom_call.1} parent=1 // pred_fallthru
      _
    // Predicated region
    $region6: #{tpu_custom_call.1} parent=1 // pred_check
      _
    $region7: #{tpu_custom_call.1} parent=1 // pred_check_branch
      %23 = sbr.rel (0) target = $region9
    $region8: #{tpu_custom_call.1} parent=1 // pred_region
      _
    $region9: #{tpu_custom_call.1} parent=1 // pred_fallthru
      _
    // Predicated region
    $region10: #{tpu_custom_call.1} parent=1 // pred_check
      _
    $region11: #{tpu_custom_call.1} parent=1 // pred_check_branch
      %25 = sbr.rel (0) target = $region13
    $region12: #{tpu_custom_call.1} parent=1 // pred_region
      _
    $region13: #{tpu_custom_call.1} parent=1 // pred_fallthru
      _
    // Predicated region
    $region14: #{tpu_custom_call.1} parent=1 // pred_check
      _
    $region15: #{tpu_custom_call.1} parent=1 // pred_check_branch
      %27 = sbr.rel (0) target = $region17
    $region16: #{tpu_custom_call.1} parent=1 // pred_region
      %28 = dma.done [#allocation4], 2048
    $region17: #{tpu_custom_call.1} parent=1 // pred_fallthru
      _
    %p29 = scmp.eq.s32.totalorder 0, 0
    // Predicated region
    $region18: #{tpu_custom_call.1} parent=1 // pred_check
      %p30 = pneg %p29
    $region19: #{tpu_custom_call.1} parent=1 // pred_check_branch
      %32 = sbr.rel (%p30) target = $region21
    $region20: #{tpu_custom_call.1} parent=1 // pred_region
      %33 = vst [vmem:[#allocation2] sm:$0xff] 0.0
      %34 = vst [vmem:[#allocation2 + $0x8] sm:$0xff] 0.0
      %35 = vst [vmem:[#allocation2 + $0x10] sm:$0xff] 0.0
      %36 = vst [vmem:[#allocation2 + $0x18] sm:$0xff] 0.0
      %37 = vst [vmem:[#allocation2 + $0x20] sm:$0xff] 0.0
      %38 = vst [vmem:[#allocation2 + $0x28] sm:$0xff] 0.0
      %39 = vst [vmem:[#allocation2 + $0x30] sm:$0xff] 0.0
      %40 = vst [vmem:[#allocation2 + $0x38] sm:$0xff] 0.0
    $region21: #{tpu_custom_call.1} parent=1 // pred_fallthru
      _
    %v41 = vld [vmem:[#allocation3] sm:$0xff]
    %v42 = vld [vmem:[#allocation3 + $0x8] sm:$0xff]
    %v43 = vld [vmem:[#allocation3 + $0x10] sm:$0xff]
    %v44 = vld [vmem:[#allocation3 + $0x18] sm:$0xff]
    %v45 = vld [vmem:[#allocation3 + $0x20] sm:$0xff]
    %v46 = vld [vmem:[#allocation3 + $0x28] sm:$0xff]
    %v47 = vld [vmem:[#allocation3 + $0x30] sm:$0xff]
    %v48 = vld [vmem:[#allocation3 + $0x38] sm:$0xff]
    %v49 = vld [vmem:[#allocation3 + $0x40] sm:$0xff]
    %v50 = vld [vmem:[#allocation3 + $0x48] sm:$0xff]
    %v51 = vld [vmem:[#allocation3 + $0x50] sm:$0xff]
    %v52 = vld [vmem:[#allocation3 + $0x58] sm:$0xff]
    %v53 = vld [vmem:[#allocation3 + $0x60] sm:$0xff]
    %v54 = vld [vmem:[#allocation3 + $0x68] sm:$0xff]
    %v55 = vld [vmem:[#allocation3 + $0x70] sm:$0xff]
    %v56 = vld [vmem:[#allocation3 + $0x78] sm:$0xff]
    %v57 = vadd.f32 %v41, %v42
    %v58 = vadd.f32 %v43, %v44
    %v59 = vadd.f32 %v45, %v46
    %v60 = vadd.f32 %v47, %v48
    %v61 = vadd.f32 %v49, %v50
    %v62 = vadd.f32 %v51, %v52
    %v63 = vadd.f32 %v53, %v54
    %v64 = vadd.f32 %v55, %v56
    %v65 = vld [vmem:[#allocation2] sm:$0xff]
    %v66 = vld [vmem:[#allocation2 + $0x8] sm:$0xff]
    %v67 = vld [vmem:[#allocation2 + $0x10] sm:$0xff]
    %v68 = vld [vmem:[#allocation2 + $0x18] sm:$0xff]
    %v69 = vld [vmem:[#allocation2 + $0x20] sm:$0xff]
    %v70 = vld [vmem:[#allocation2 + $0x28] sm:$0xff]
    %v71 = vld [vmem:[#allocation2 + $0x30] sm:$0xff]
    %v72 = vld [vmem:[#allocation2 + $0x38] sm:$0xff]
    %v73 = vadd.f32 %v65, %v57
    %v74 = vadd.f32 %v66, %v58
    %v75 = vadd.f32 %v67, %v59
    %v76 = vadd.f32 %v68, %v60
    %v77 = vadd.f32 %v69, %v61
    %v78 = vadd.f32 %v70, %v62
    %v79 = vadd.f32 %v71, %v63
    %v80 = vadd.f32 %v72, %v64
    %81 = vst [vmem:[#allocation2] sm:$0xff] %v73
    %82 = vst [vmem:[#allocation2 + $0x8] sm:$0xff] %v74
    %83 = vst [vmem:[#allocation2 + $0x10] sm:$0xff] %v75
    %84 = vst [vmem:[#allocation2 + $0x18] sm:$0xff] %v76
    %85 = vst [vmem:[#allocation2 + $0x20] sm:$0xff] %v77
    %86 = vst [vmem:[#allocation2 + $0x28] sm:$0xff] %v78
    %87 = vst [vmem:[#allocation2 + $0x30] sm:$0xff] %v79
    %88 = vst [vmem:[#allocation2 + $0x38] sm:$0xff] %v80
    // Predicated region
    $region22: #{tpu_custom_call.1} parent=1 // pred_check
      %p89 = pneg %p29
    $region23: #{tpu_custom_call.1} parent=1 // pred_check_branch
      %91 = sbr.rel (%p89) target = $region25
    $region24: #{tpu_custom_call.1} parent=1 // pred_region
      %v92 = vld [vmem:[#allocation2] sm:$0xff]
      %v93 = vld [vmem:[#allocation2 + $0x8] sm:$0xff]
      %v94 = vld [vmem:[#allocation2 + $0x10] sm:$0xff]
      %v95 = vld [vmem:[#allocation2 + $0x18] sm:$0xff]
      %v96 = vld [vmem:[#allocation2 + $0x20] sm:$0xff]
      %v97 = vld [vmem:[#allocation2 + $0x28] sm:$0xff]
      %v98 = vld [vmem:[#allocation2 + $0x30] sm:$0xff]
      %v99 = vld [vmem:[#allocation2 + $0x38] sm:$0xff]
      %100 = vadd.xlane.f32.xlu0 %v92
      %v101 = vpop.xlane.xlu0 %100
      %102 = vadd.xlane.f32.xlu0 %v93
      %v103 = vpop.xlane.xlu0 %102
      %104 = vadd.xlane.f32.xlu0 %v94
      %v105 = vpop.xlane.xlu0 %104
      %106 = vadd.xlane.f32.xlu0 %v95
      %v107 = vpop.xlane.xlu0 %106
      %108 = vadd.xlane.f32.xlu0 %v96
      %v109 = vpop.xlane.xlu0 %108
      %110 = vadd.xlane.f32.xlu0 %v97
      %v111 = vpop.xlane.xlu0 %110
      %112 = vadd.xlane.f32.xlu0 %v98
      %v113 = vpop.xlane.xlu0 %112
      %114 = vadd.xlane.f32.xlu0 %v99
      %v115 = vpop.xlane.xlu0 %114
      %v116 = vmul.f32 %v101, 0.00390625
      %v117 = vmul.f32 %v103, 0.00390625
      %v118 = vmul.f32 %v105, 0.00390625
      %v119 = vmul.f32 %v107, 0.00390625
      %v120 = vmul.f32 %v109, 0.00390625
      %v121 = vmul.f32 %v111, 0.00390625
      %v122 = vmul.f32 %v113, 0.00390625
      %v123 = vmul.f32 %v115, 0.00390625
      %v124 = vld [vmem:[%s1] sm:$0xff]
      %v125 = vld [vmem:[%s1 + $0x8] sm:$0xff]
      %v126 = vld [vmem:[%s1 + $0x10] sm:$0xff]
      %v127 = vld [vmem:[%s1 + $0x18] sm:$0xff]
      %v136 = vlaneseq
      %v137 = vand.u32 %v136, 127
      %v138 = vlaneseq
      %v139 = vshrl.u32 %v138, 7
      %v140 = vsub.s32 %v137, %v139
      %v141 = vrot.slane %v116, %v140
      %v142 = vadd.s32 %v137, 4294967288
      %v143 = vlaneseq
      %v144 = vshrl.u32 %v143, 7
      %v145 = vsub.s32 %v142, %v144
      %v146 = vrot.slane %v117, %v145
      %vm147 = vcmask 130112
      %v148 = vsel %vm147, %v146, %v141
      %v149 = vadd.s32 %v137, 4294967280
      %v150 = vlaneseq
      %v151 = vshrl.u32 %v150, 7
      %v152 = vsub.s32 %v149, %v151
      %v153 = vrot.slane %v118, %v152
      %vm154 = vcmask 195712
      %v155 = vsel %vm154, %v153, %v148
      %v156 = vadd.s32 %v137, 4294967272
      %v157 = vlaneseq
      %v158 = vshrl.u32 %v157, 7
      %v159 = vsub.s32 %v156, %v158
      %v160 = vrot.slane %v119, %v159
      %vm161 = vcmask 261312
      %v162 = vsel %vm161, %v160, %v155
      %v163 = vlaneseq
      %v164 = vshrl.u32 %v163, 7
      %v165 = vsub.s32 %v137, %v164
      %v166 = vrot.slane %v120, %v165
      %v167 = vlaneseq
      %v168 = vshrl.u32 %v167, 7
      %v169 = vsub.s32 %v142, %v168
      %v170 = vrot.slane %v121, %v169
      %v171 = vsel %vm147, %v170, %v166
      %v172 = vlaneseq
      %v173 = vshrl.u32 %v172, 7
      %v174 = vsub.s32 %v149, %v173
      %v175 = vrot.slane %v122, %v174
      %v176 = vsel %vm154, %v175, %v171
      %v177 = vlaneseq
      %v178 = vshrl.u32 %v177, 7
      %v179 = vsub.s32 %v156, %v178
      %v180 = vrot.slane %v123, %v179
      %v181 = vsel %vm161, %v180, %v176
      %vm182 = vcmask 1041409
      %v183 = vsel %vm182, %v181, %v162
      %vm184 = vcmask 261120
      %v185 = vsel %vm184, %v183, 0
      %187 = vmatprep.subr.mxu0 0.0
      %188 = vmatpush1.msra.mxu0 %v124
      %189 = vmatprep.subr.mxu0 0.0
      %190 = vmatpush1.msra.mxu0 %v125
      %191 = vmatprep.subr.mxu0 0.0
      %192 = vmatpush1.msra.mxu0 %v126
      %193 = vmatprep.subr.mxu0 0.0
      %194 = vmatpush1.msra.mxu0 %v127
      %195 = vmatprep.subr.mxu0 0.0
      %196 = vmatpush1.msra.mxu0 0.0
      %197 = vmatprep.subr.mxu0 0.0
      %198 = vmatpush1.msra.mxu0 0.0
      %199 = vmatprep.subr.mxu0 0.0
      %200 = vmatpush1.msra.mxu0 0.0
      %201 = vmatprep.subr.mxu0 0.0
      %202 = vmatpush1.msra.mxu0 0.0
      %203 = vmatprep.subr.mxu0 0.0
      %204 = vmatpush1.msra.mxu0 0.0
      %205 = vmatprep.subr.mxu0 0.0
      %206 = vmatpush1.msra.mxu0 0.0
      %207 = vmatprep.subr.mxu0 0.0
      %208 = vmatpush1.msra.mxu0 0.0
      %209 = vmatprep.subr.mxu0 0.0
      %210 = vmatpush1.msra.mxu0 0.0
      %211 = vmatprep.subr.mxu0 0.0
      %212 = vmatpush1.msra.mxu0 0.0
      %213 = vmatprep.subr.mxu0 0.0
      %214 = vmatpush1.msra.mxu0 0.0
      %215 = vmatprep.subr.mxu0 0.0
      %216 = vmatpush1.msra.mxu0 0.0
      %217 = vmatprep.subr.mxu0 0.0
      %218 = vmatpush1.msra.mxu0 0.0
      %219 = vmatprep.subr.mxu0 0.0
      %220 = vmatpush1.msra.mxu0 0.0
      %221 = vmatprep.subr.mxu0 0.0
      %222 = vmatpush1.msra.mxu0 0.0
      %223 = vmatprep.subr.mxu0 0.0
      %224 = vmatpush1.msra.mxu0 0.0
      %225 = vmatprep.subr.mxu0 0.0
      %226 = vmatpush1.msra.mxu0 0.0
      %227 = vmatprep.subr.mxu0 0.0
      %228 = vmatpush1.msra.mxu0 0.0
      %229 = vmatprep.subr.mxu0 0.0
      %230 = vmatpush1.msra.mxu0 0.0
      %231 = vmatprep.subr.mxu0 0.0
      %232 = vmatpush1.msra.mxu0 0.0
      %233 = vmatprep.subr.mxu0 0.0
      %234 = vmatpush1.msra.mxu0 0.0
      %235 = vmatprep.subr.mxu0 0.0
      %236 = vmatpush1.msra.mxu0 0.0
      %237 = vmatprep.subr.mxu0 0.0
      %238 = vmatpush1.msra.mxu0 0.0
      %239 = vmatprep.subr.mxu0 0.0
      %240 = vmatpush1.msra.mxu0 0.0
      %241 = vmatprep.subr.mxu0 0.0
      %242 = vmatpush1.msra.mxu0 0.0
      %243 = vmatprep.subr.mxu0 0.0
      %244 = vmatpush1.msra.mxu0 0.0
      %245 = vmatprep.subr.mxu0 0.0
      %246 = vmatpush1.msra.mxu0 0.0
      %247 = vmatprep.subr.mxu0 0.0
      %248 = vmatpush1.msra.mxu0 0.0
      %249 = vmatprep.subr.mxu0 0.0
      %250 = vmatpush1.msra.mxu0 0.0
      %251 = vmatprep.mubr.f32.mxu0 0.0
      %252 = vmatmul.mubr.f32.gmra.mrb[0].mxu0 %v185
      %v253 = vpop.f32.mrb[0].mxu0
      %v254 = vadd.f32 0.0, %v253
      %v255 = vpop.f32.mrb[0].mxu0
      %256 = vdwg.mxu0
      %v257 = vmax.f32 %v254, 0.0
      %v258 = vld [vmem:[%s2] sm:$0x3]
      %vm259 = vcmask 15360
      %v261 = vsel %vm259, %v257, 0
      %vm263 = vcmask 1041408
      %v265 = vsel %vm263, %v258, 0
      %267 = vmatprep.subr.mxu0 0.0
      %268 = vmatpush1.msra.mxu0 %v265
      %269 = vmatprep.subr.mxu0 0.0
      %270 = vmatpush1.msra.mxu0 0.0
      %271 = vmatprep.subr.mxu0 0.0
      %272 = vmatpush1.msra.mxu0 0.0
      %273 = vmatprep.subr.mxu0 0.0
      %274 = vmatpush1.msra.mxu0 0.0
      %275 = vmatprep.subr.mxu0 0.0
      %276 = vmatpush1.msra.mxu0 0.0
      %277 = vmatprep.subr.mxu0 0.0
      %278 = vmatpush1.msra.mxu0 0.0
      %279 = vmatprep.subr.mxu0 0.0
      %280 = vmatpush1.msra.mxu0 0.0
      %281 = vmatprep.subr.mxu0 0.0
      %282 = vmatpush1.msra.mxu0 0.0
      %283 = vmatprep.subr.mxu0 0.0
      %284 = vmatpush1.msra.mxu0 0.0
      %285 = vmatprep.subr.mxu0 0.0
      %286 = vmatpush1.msra.mxu0 0.0
      %287 = vmatprep.subr.mxu0 0.0
      %288 = vmatpush1.msra.mxu0 0.0
      %289 = vmatprep.subr.mxu0 0.0
      %290 = vmatpush1.msra.mxu0 0.0
      %291 = vmatprep.subr.mxu0 0.0
      %292 = vmatpush1.msra.mxu0 0.0
      %293 = vmatprep.subr.mxu0 0.0
      %294 = vmatpush1.msra.mxu0 0.0
      %295 = vmatprep.subr.mxu0 0.0
      %296 = vmatpush1.msra.mxu0 0.0
      %297 = vmatprep.subr.mxu0 0.0
      %298 = vmatpush1.msra.mxu0 0.0
      %299 = vmatprep.subr.mxu0 0.0
      %300 = vmatpush1.msra.mxu0 0.0
      %301 = vmatprep.subr.mxu0 0.0
      %302 = vmatpush1.msra.mxu0 0.0
      %303 = vmatprep.subr.mxu0 0.0
      %304 = vmatpush1.msra.mxu0 0.0
      %305 = vmatprep.subr.mxu0 0.0
      %306 = vmatpush1.msra.mxu0 0.0
      %307 = vmatprep.subr.mxu0 0.0
      %308 = vmatpush1.msra.mxu0 0.0
      %309 = vmatprep.subr.mxu0 0.0
      %310 = vmatpush1.msra.mxu0 0.0
      %311 = vmatprep.subr.mxu0 0.0
      %312 = vmatpush1.msra.mxu0 0.0
      %313 = vmatprep.subr.mxu0 0.0
      %314 = vmatpush1.msra.mxu0 0.0
      %315 = vmatprep.subr.mxu0 0.0
      %316 = vmatpush1.msra.mxu0 0.0
      %317 = vmatprep.subr.mxu0 0.0
      %318 = vmatpush1.msra.mxu0 0.0
      %319 = vmatprep.subr.mxu0 0.0
      %320 = vmatpush1.msra.mxu0 0.0
      %321 = vmatprep.subr.mxu0 0.0
      %322 = vmatpush1.msra.mxu0 0.0
      %323 = vmatprep.subr.mxu0 0.0
      %324 = vmatpush1.msra.mxu0 0.0
      %325 = vmatprep.subr.mxu0 0.0
      %326 = vmatpush1.msra.mxu0 0.0
      %327 = vmatprep.subr.mxu0 0.0
      %328 = vmatpush1.msra.mxu0 0.0
      %329 = vmatprep.subr.mxu0 0.0
      %330 = vmatpush1.msra.mxu0 0.0
      %331 = vmatprep.mubr.f32.mxu0 0.0
      %332 = vmatmul.mubr.f32.gmra.mrb[0].mxu0 %v261
      %v333 = vpop.f32.mrb[0].mxu0
      %v334 = vadd.f32 0.0, %v333
      %v335 = vpop.f32.mrb[0].mxu0
      %336 = vdwg.mxu0
      %v337 = vxor.u32 %v334, 2147483648
      %v338 = vmul.f32 %v337, 1.442695
      %v339 = vpow.pop %v338
      %v340 = vadd.f32 %v339, 1.0
      %v341 = vrcp.pop %v340
      %v342 = vmul.f32 1.0, %v341
      %vm343 = vcmask 254976
      %344 = vst.msk [vmem:[#allocation6] sm:$0x3] %vm343, %v342
    $region25: #{tpu_custom_call.1} parent=1 // pred_fallthru
      _
    // Predicated region
    $region26: #{tpu_custom_call.1} parent=1 // pred_check
      _
    $region27: #{tpu_custom_call.1} parent=1 // pred_check_branch
      %346 = sbr.rel (0) target = $region29
    $region28: #{tpu_custom_call.1} parent=1 // pred_region
      %s348 = ssub.s32 32, 32
      %349 = vsyncadd [#allocation5], %s348
      %s351 = sshll.u32 [#allocation6], 4
      %s352 = int_to_ptr.vmem [resolvable:$true] %s351
      %354 = dma.vmem_to_hbm [thread:$0]  %s352, 32, %s3, [#allocation5]
    $region29: #{tpu_custom_call.1} parent=1 // pred_fallthru
      _
    // Predicated region
    $region30: #{tpu_custom_call.1} parent=1 // pred_check
      _
    $region31: #{tpu_custom_call.1} parent=1 // pred_check_branch
      %356 = sbr.rel (0) target = $region33
    $region32: #{tpu_custom_call.1} parent=1 // pred_region
      %357 = dma.done [#allocation5], 32
    $region33: #{tpu_custom_call.1} parent=1 // pred_fallthru
      _
    %358 = vsyncpa [#allocation4], 1
    %359 = vsyncpa [#allocation5], 1

</llo_original>
